<compile_context>
chip_gen: v6e
topology: v6e:2x2x1
jax: 0.10.0
libtpu: 0.0.40
codegen_flags: <defaults>
</compile_context>

<pallas_src>
import functools

import jax
import jax.numpy as jnp
from jax.experimental import pallas as pl
from jax.experimental.pallas import tpu as pltpu


def _contrastive_loss_kernel(im_i_ref, s_j_ref, md1_ref, md2_ref, out_ref, *,
                             rs: int, rl: int):
    """One (row-block i, col-block j) step of the hinge-sum reduction."""
    j = pl.program_id(1)

    # The (1, rs, rl) output block keeps the same block index for the whole j
    # sweep of a given i, so it is VMEM-resident and doubles as accumulator.
    @pl.when(j == 0)
    def _init():
        out_ref[...] = jnp.zeros_like(out_ref)

    im_i = im_i_ref[...]            # (tm, D), native dtype, resident over j
    s_j = s_j_ref[...]              # (tn, D), native dtype, streamed

    # scores[a, b] = <im_i[a], s_j[b]> : contract dim 1 of BOTH operands
    # (no materialized transpose), f32 accumulation on the MXU.
    scores = jax.lax.dot_general(
        im_i, s_j,
        dimension_numbers=(((1,), (1,)), ((), ())),
        preferred_element_type=jnp.float32)                 # (tm, tn) f32

    # margin already folded on the host:
    #   md1[a, 0] = margin - <im_a, s_a>   (rows of block i)
    #   md2[0, b] = margin - <im_b, s_b>   (cols of block j)
    cost = (jnp.maximum(scores + md1_ref[...], 0.0) +
            jnp.maximum(scores + md2_ref[...], 0.0))        # (tm, tn) f32

    # Vreg-wise partial reduction: fold the tile onto an (rs, rl) slab with
    # pure element-wise adds (no per-step cross-lane/sublane XLU reduce).
    tm, tn = cost.shape
    folded = cost.reshape(tm // rs, rs, tn // rl, rl).sum(axis=(0, 2))
    out_ref[...] += folded[None, :, :]


def _vmem_capacity_bytes() -> int:
    """Per-core VMEM capacity; conservative default if the query fails."""
    try:
        cap = int(getattr(pltpu.get_tpu_info(), "vmem_capacity_bytes", 0))
        if cap > 0:
            return cap
    except Exception:
        pass
    return 64 * 1024 * 1024          # v7x per-TensorCore capacity (smallest)


def _pick_tile(b: int, d: int, itemsize: int, budget_bytes: int) -> int:
    """Largest MXU-friendly row tile (multiple of 128, divisor of b) whose
    double-buffered inputs + f32 tile intermediates fit the VMEM budget."""
    candidates = [t for t in (1024, 512, 256, 128) if b % t == 0]
    for t in candidates:
        inputs = 4 * t * d * itemsize      # im + s blocks, double-buffered
        inter = 4 * t * t * 4              # scores + hinge temporaries (f32)
        if inputs + inter <= budget_bytes:
            return t
    if candidates:
        # TODO(synk): tile the embed (D) axis with a third grid dim instead of
        # relying on vmem_limit_bytes when D is extremely large.
        return candidates[-1]
    # Small / ragged batch: single block spanning the full batch dimension.
    return b


def contrastive_loss_coot(im: jax.Array, s: jax.Array, margin: float = 0.1) -> jax.Array:
    """im, s: (batch, embed_dim). Returns the scalar f32 contrastive loss."""
    assert im.ndim == 2 and im.shape == s.shape
    B, D = im.shape
    itemsize = jnp.dtype(im.dtype).itemsize

    vmem_cap = _vmem_capacity_bytes()
    # ~48 MiB scoped on v7x (64 MiB physical), ~96 MiB on v5e/v6e (128 MiB).
    vmem_limit = int(min(max((3 * vmem_cap) // 4, 32 << 20), 100 << 20))
    tile = _pick_tile(B, D, itemsize, budget_bytes=int(vmem_limit * 0.8))
    tm = tn = tile
    ni, nj = B // tm, B // tn

    # Per-row-block partial-sum slab: vreg-shaped (8, 128) when the tile folds
    # onto it, otherwise the (small) tile itself (full-dim blocks are legal).
    rs = 8 if tm % 8 == 0 else tm
    rl = 128 if tn % 128 == 0 else tn

    # Host-side diagonal <im_i, s_i> (f32) with the margin folded in; fed as
    # tiny (B,1)/(1,B) operands instead of re-streaming im/s for the diagonal.
    diag = jnp.sum(im.astype(jnp.float32) * s.astype(jnp.float32), axis=1)
    md1 = (jnp.float32(margin) - diag).reshape(B, 1)
    md2 = (jnp.float32(margin) - diag).reshape(1, B)

    kernel = functools.partial(_contrastive_loss_kernel, rs=rs, rl=rl)

    cost = pl.CostEstimate(
        flops=2 * B * B * D + 6 * B * B,
        transcendentals=0,
        bytes_accessed=(B * D + ni * B * D) * itemsize + 8 * B * 4
        + ni * rs * rl * 4,
    )

    partials = pl.pallas_call(
        kernel,
        out_shape=jax.ShapeDtypeStruct((ni, rs, rl), jnp.float32),
        grid=(ni, nj),
        in_specs=[
            pl.BlockSpec((tm, D), lambda i, j: (i, 0)),   # im rows, block i (resident over j)
            pl.BlockSpec((tn, D), lambda i, j: (j, 0)),   # s  rows, block j (streamed)
            pl.BlockSpec((tm, 1), lambda i, j: (i, 0)),   # margin - diag, row vector
            pl.BlockSpec((1, tn), lambda i, j: (0, j)),   # margin - diag, col vector
        ],
        out_specs=pl.BlockSpec((1, rs, rl), lambda i, j: (i, 0, 0)),
        compiler_params=pltpu.CompilerParams(
            # Row blocks are independent (splittable across v7x's 2 cores);
            # the j axis reduces into the resident output block.
            dimension_semantics=("parallel", "arbitrary"),
            vmem_limit_bytes=vmem_limit,
        ),
        cost_estimate=cost,
    )(im, s, md1, md2)

    # Diagonal hinge value is analytically max(margin, 0) for both cost_s and
    # cost_im -> subtract 2*B*max(margin, 0) once, then normalize by B^2.
    total = jnp.sum(partials, dtype=jnp.float32)
    total = total - 2.0 * B * max(float(margin), 0.0)
    return total / jnp.float32(B * B)


def _reference_loss(im, s, margin=0.1):
    """Pure-JAX port of the PyTorch module (source of truth for validation)."""
    scores = im.astype(jnp.float32) @ s.astype(jnp.float32).T
    diag = jnp.diag(scores).reshape(-1, 1)
    cost_s = jnp.maximum(margin + scores - diag, 0.0)
    cost_im = jnp.maximum(margin + scores - diag.T, 0.0)
    eye = jnp.eye(scores.shape[0], dtype=bool)
    cost_s = jnp.where(eye, 0.0, cost_s)
    cost_im = jnp.where(eye, 0.0, cost_im)
    return (jnp.sum(cost_s) + jnp.sum(cost_im)) / (im.shape[0] * s.shape[0])


if __name__ == "__main__":
    key = jax.random.PRNGKey(0)
    k1, k2, k3, k4 = jax.random.split(key, 4)

    # Small (batch, embed_dim) inputs consistent with the module.
    B, D = 8, 32
    im = jax.random.normal(k1, (B, D), dtype=jnp.float32)
    s = jax.random.normal(k2, (B, D), dtype=jnp.float32)
    loss = jax.block_until_ready(contrastive_loss_coot(im, s, margin=0.1))
    ref = _reference_loss(im, s, margin=0.1)
    assert jnp.allclose(loss, ref, atol=2e-5, rtol=1e-5), (loss, ref)

    # Multi-tile path (3x3 grid of 128x128 tiles) sanity check.
    B2, D2 = 384, 64
    im2 = jax.random.normal(k3, (B2, D2), dtype=jnp.float32)
    s2 = jax.random.normal(k4, (B2, D2), dtype=jnp.float32)
    loss2 = jax.block_until_ready(contrastive_loss_coot(im2, s2, margin=0.1))
    ref2 = _reference_loss(im2, s2, margin=0.1)
    assert jnp.allclose(loss2, ref2, rtol=1e-3, atol=1e-3), (loss2, ref2)

    print("KERNEL_OK")
</pallas_src>

<mosaic_0001>
module attributes {stable_mosaic.version = 11 : i64} {
  func.func @_contrastive_loss_kernel(%arg0: i32, %arg1: i32, %arg2: memref<8x32xf32, #tpu.memory_space<vmem>>, %arg3: memref<8x32xf32, #tpu.memory_space<vmem>>, %arg4: memref<8x1xf32, #tpu.memory_space<vmem>>, %arg5: memref<1x8xf32, #tpu.memory_space<vmem>>, %arg6: memref<1x8x8xf32, #tpu.memory_space<vmem>>) attributes {dimension_semantics = [#tpu.dimension_semantics<parallel>, #tpu.dimension_semantics<arbitrary>], iteration_bounds = array<i64: 1, 1>, scalar_prefetch = 0 : i64, scratch_operands = 0 : i64, tpu.core_type = #tpu.core_type<tc>, window_params = [{transform_indices = @transform_0, window_bounds = array<i64: 8, 32>}, {transform_indices = @transform_1, window_bounds = array<i64: 8, 32>}, {transform_indices = @transform_2, window_bounds = array<i64: 8, 1>}, {transform_indices = @transform_3, window_bounds = array<i64: 1, 8>}, {transform_indices = @transform_4, window_bounds = array<i64: 1, 8, 8>}]} {
    %c0_i32 = arith.constant 0 : i32
    %0 = arith.cmpi eq, %arg1, %c0_i32 : i32
    %1 = arith.extui %0 : i1 to i32
    %c0_i32_0 = arith.constant 0 : i32
    %2 = arith.cmpi ne, %1, %c0_i32_0 : i32
    scf.if %2 {
      %cst_17 = arith.constant 0.000000e+00 : f32
      %23 = vector.broadcast %cst_17 : f32 to vector<1x8x8xf32>
      %c0_18 = arith.constant 0 : index
      %c0_19 = arith.constant 0 : index
      %c0_20 = arith.constant 0 : index
      %24 = vector.load %arg6[%c0_18, %c0_19, %c0_20] : memref<1x8x8xf32, #tpu.memory_space<vmem>>, vector<1x8x8xf32>
      tpu.vector_store %arg6[%c0_18, %c0_19, %c0_20], %23 {strides = array<i32>} : memref<1x8x8xf32, #tpu.memory_space<vmem>>, vector<1x8x8xf32>,
    } else {
    }
    %c0 = arith.constant 0 : index
    %c0_1 = arith.constant 0 : index
    %3 = vector.load %arg2[%c0, %c0_1] : memref<8x32xf32, #tpu.memory_space<vmem>>, vector<8x32xf32>
    %c0_2 = arith.constant 0 : index
    %c0_3 = arith.constant 0 : index
    %4 = vector.load %arg3[%c0_2, %c0_3] : memref<8x32xf32, #tpu.memory_space<vmem>>, vector<8x32xf32>
    %cst = arith.constant dense<0.000000e+00> : vector<8x8xf32>
    %5 = tpu.matmul %3, %4, %cst {dimension_numbers = #tpu.dot_dimension_numbers<[1], [1], [0], [0], [0, 0, 1, 0], [], []>} : vector<8x32xf32>, vector<8x32xf32>, vector<8x8xf32> -> vector<8x8xf32>
    %c0_4 = arith.constant 0 : index
    %c0_5 = arith.constant 0 : index
    %6 = vector.load %arg4[%c0_4, %c0_5] : memref<8x1xf32, #tpu.memory_space<vmem>>, vector<8x1xf32>
    %7 = vector.broadcast %6 : vector<8x1xf32> to vector<8x8xf32>
    %8 = arith.addf %5, %7 : vector<8x8xf32>
    %cst_6 = arith.constant 0.000000e+00 : f32
    %9 = vector.broadcast %cst_6 : f32 to vector<8x8xf32>
    %10 = arith.maximumf %8, %9 : vector<8x8xf32>
    %c0_7 = arith.constant 0 : index
    %c0_8 = arith.constant 0 : index
    %11 = vector.load %arg5[%c0_7, %c0_8] : memref<1x8xf32, #tpu.memory_space<vmem>>, vector<1x8xf32>
    %12 = vector.broadcast %11 : vector<1x8xf32> to vector<8x8xf32>
    %13 = arith.addf %5, %12 : vector<8x8xf32>
    %cst_9 = arith.constant 0.000000e+00 : f32
    %14 = vector.broadcast %cst_9 : f32 to vector<8x8xf32>
    %15 = arith.maximumf %13, %14 : vector<8x8xf32>
    %16 = arith.addf %10, %15 : vector<8x8xf32>
    %17 = vector.shape_cast %16 : vector<8x8xf32> to vector<1x8x1x8xf32>
    %cst_10 = arith.constant dense<0.000000e+00> : vector<8x8xf32>
    %18 = vector.multi_reduction <add>, %17, %cst_10 [0, 2] : vector<1x8x1x8xf32> to vector<8x8xf32>
    %c0_11 = arith.constant 0 : index
    %c0_12 = arith.constant 0 : index
    %c0_13 = arith.constant 0 : index
    %19 = vector.load %arg6[%c0_11, %c0_12, %c0_13] : memref<1x8x8xf32, #tpu.memory_space<vmem>>, vector<1x8x8xf32>
    %20 = vector.shape_cast %18 : vector<8x8xf32> to vector<1x8x8xf32>
    %21 = arith.addf %19, %20 : vector<1x8x8xf32>
    %c0_14 = arith.constant 0 : index
    %c0_15 = arith.constant 0 : index
    %c0_16 = arith.constant 0 : index
    %22 = vector.load %arg6[%c0_14, %c0_15, %c0_16] : memref<1x8x8xf32, #tpu.memory_space<vmem>>, vector<1x8x8xf32>
    tpu.vector_store %arg6[%c0_14, %c0_15, %c0_16], %21 {strides = array<i32>} : memref<1x8x8xf32, #tpu.memory_space<vmem>>, vector<1x8x8xf32>,
    return
  }
  func.func @transform_0(%arg0: i32, %arg1: i32) -> (i32, i32) {
    %c0_i32 = arith.constant 0 : i32
    %c0_i32_0 = arith.constant 0 : i32
    return %arg0, %c0_i32 : i32, i32
  }
  func.func @transform_1(%arg0: i32, %arg1: i32) -> (i32, i32) {
    %c0_i32 = arith.constant 0 : i32
    %c0_i32_0 = arith.constant 0 : i32
    return %arg1, %c0_i32 : i32, i32
  }
  func.func @transform_2(%arg0: i32, %arg1: i32) -> (i32, i32) {
    %c0_i32 = arith.constant 0 : i32
    %c0_i32_0 = arith.constant 0 : i32
    return %arg0, %c0_i32 : i32, i32
  }
  func.func @transform_3(%arg0: i32, %arg1: i32) -> (i32, i32) {
    %c0_i32 = arith.constant 0 : i32
    %c0_i32_0 = arith.constant 0 : i32
    return %c0_i32, %arg1 : i32, i32
  }
  func.func @transform_4(%arg0: i32, %arg1: i32) -> (i32, i32, i32) {
    %c0_i32 = arith.constant 0 : i32
    %c0_i32_0 = arith.constant 0 : i32
    %c0_i32_1 = arith.constant 0 : i32
    return %arg0, %c0_i32, %c0_i32_0 : i32, i32, i32
  }
}

</mosaic_0001>

<llo_original>
// kernel: tpu_custom_call.1
$region0: #{tpu_custom_call.1}
  #allocation0 [shape = 'u32[]', space=smem, size = 0x4, offset = 0x4, fixed_abs, tag = 'smem constant byte address 0x4 - core index']
  #allocation1 [shape = 'u32[144,128]{1,0:T(1,128)}', space=vmem, size = 0x12000, scoped, tag = 'internal scratch']
  %s0 = inlined_call_operand.vmem [shape: f32[8,32], index: 0, kind: input, shape index: {}]
  %s1 = inlined_call_operand.hbm [shape: f32[8,32], index: 1, kind: input, shape index: {}]
  %s2 = inlined_call_operand.vmem [shape: f32[8,1], index: 2, kind: input, shape index: {}]
  %s3 = inlined_call_operand.vmem [shape: f32[1,8], index: 3, kind: input, shape index: {}]
  %s4 = inlined_call_operand.hbm [shape: f32[1,8,8], index: 4, kind: output, shape index: {}]
  %s5 = sld [smem:[#allocation0]]
  $region34: #{tpu_custom_call.1} parent=0
    _
  %s7 = ssub.s32 1, %s5
  %s8 = scalar_select 0, %s7, %s5
  $region1: #{tpu_custom_call.1} parent=0
    #allocation2 [shape = 'u8[4096]{0}', space=vmem, size = 0x1000, scoped, tag = 'input window, operand 1, single buffered']
    #allocation3 [shape = 's32[1]{0}', space=sflag, size = 0x4, scoped, tag = 'scoped memory for tpu_custom_call.1']
    #allocation4 [shape = 's32[1]{0}', space=sflag, size = 0x4, scoped, tag = 'scoped memory for tpu_custom_call.1']
    #allocation5 [shape = 'u8[4096]{0}', space=vmem, size = 0x1000, scoped, tag = 'output window, operand 0, single buffered']
    %9 = vsyncpa [#allocation3], 0
    %10 = vsyncpa [#allocation4], 0
    // Predicated region
    $region2: #{tpu_custom_call.1} parent=1 // pred_check
      _
    $region3: #{tpu_custom_call.1} parent=1 // pred_check_branch
      %12 = sbr.rel (0) target = $region5
    $region4: #{tpu_custom_call.1} parent=1 // pred_region
      _
    $region5: #{tpu_custom_call.1} parent=1 // pred_fallthru
      _
    // Predicated region
    $region6: #{tpu_custom_call.1} parent=1 // pred_check
      _
    $region7: #{tpu_custom_call.1} parent=1 // pred_check_branch
      %14 = sbr.rel (0) target = $region9
    $region8: #{tpu_custom_call.1} parent=1 // pred_region
      %s16 = ssub.s32 128, 128
      %17 = vsyncadd [#allocation3], %s16
      %s19 = sshll.u32 [#allocation2], 4
      %s20 = int_to_ptr.vmem [resolvable:$true] %s19
      %22 = dma.hbm_to_vmem [thread:$0]  %s1, 128, %s20, [#allocation3]
    $region9: #{tpu_custom_call.1} parent=1 // pred_fallthru
      _
    // Predicated region
    $region10: #{tpu_custom_call.1} parent=1 // pred_check
      _
    $region11: #{tpu_custom_call.1} parent=1 // pred_check_branch
      %24 = sbr.rel (0) target = $region13
    $region12: #{tpu_custom_call.1} parent=1 // pred_region
      _
    $region13: #{tpu_custom_call.1} parent=1 // pred_fallthru
      _
    // Predicated region
    $region14: #{tpu_custom_call.1} parent=1 // pred_check
      _
    $region15: #{tpu_custom_call.1} parent=1 // pred_check_branch
      %26 = sbr.rel (0) target = $region17
    $region16: #{tpu_custom_call.1} parent=1 // pred_region
      _
    $region17: #{tpu_custom_call.1} parent=1 // pred_fallthru
      _
    // Predicated region
    $region18: #{tpu_custom_call.1} parent=1 // pred_check
      _
    $region19: #{tpu_custom_call.1} parent=1 // pred_check_branch
      %28 = sbr.rel (0) target = $region21
    $region20: #{tpu_custom_call.1} parent=1 // pred_region
      %29 = dma.done [#allocation3], 128
    $region21: #{tpu_custom_call.1} parent=1 // pred_fallthru
      _
    %p30 = scmp.eq.s32.totalorder 0, 0
    // Predicated region
    $region22: #{tpu_custom_call.1} parent=1 // pred_check
      %p31 = pneg %p30
    $region23: #{tpu_custom_call.1} parent=1 // pred_check_branch
      %33 = sbr.rel (%p31) target = $region25
    $region24: #{tpu_custom_call.1} parent=1 // pred_region
      %vm34 = vcmask 64512
      %35 = vst.msk [vmem:[#allocation5] sm:$0xff] %vm34, 0.0
    $region25: #{tpu_custom_call.1} parent=1 // pred_fallthru
      _
    %v36 = vld [vmem:[%s0] sm:$0xff]
    %v37 = vld [vmem:[#allocation2] sm:$0xff]
    %vm38 = vcmask 261120
    %v40 = vsel %vm38, %v36, 0
    %v43 = vsel %vm38, %v37, 0
    %45 = vmatprep.subr.mxu0 0.0
    %46 = vmatpush1.xpose.msra.mxu0 0.0
    %47 = vmatprep.subr.mxu0 0.0
    %48 = vmatpush1.xpose.msra.mxu0 0.0
    %49 = vmatprep.subr.mxu0 0.0
    %50 = vmatpush1.xpose.msra.mxu0 0.0
    %51 = vmatprep.subr.mxu0 0.0
    %52 = vmatpush1.xpose.msra.mxu0 0.0
    %53 = vmatprep.subr.mxu0 0.0
    %54 = vmatpush1.xpose.msra.mxu0 0.0
    %55 = vmatprep.subr.mxu0 0.0
    %56 = vmatpush1.xpose.msra.mxu0 0.0
    %57 = vmatprep.subr.mxu0 0.0
    %58 = vmatpush1.xpose.msra.mxu0 0.0
    %59 = vmatprep.subr.mxu0 0.0
    %60 = vmatpush1.xpose.msra.mxu0 0.0
    %61 = vmatprep.subr.mxu0 0.0
    %62 = vmatpush1.xpose.msra.mxu0 0.0
    %63 = vmatprep.subr.mxu0 0.0
    %64 = vmatpush1.xpose.msra.mxu0 0.0
    %65 = vmatprep.subr.mxu0 0.0
    %66 = vmatpush1.xpose.msra.mxu0 0.0
    %67 = vmatprep.subr.mxu0 0.0
    %68 = vmatpush1.xpose.msra.mxu0 0.0
    %69 = vmatprep.subr.mxu0 0.0
    %70 = vmatpush1.xpose.msra.mxu0 0.0
    %71 = vmatprep.subr.mxu0 0.0
    %72 = vmatpush1.xpose.msra.mxu0 0.0
    %73 = vmatprep.subr.mxu0 0.0
    %74 = vmatpush1.xpose.msra.mxu0 0.0
    %75 = vmatprep.subr.mxu0 0.0
    %76 = vmatpush1.xpose.msra.mxu0 %v43
    %77 = vmatprep.subr.mxu0 0.0
    %78 = vmatpush2.xpose.msra.mxu0 0.0
    %79 = vmatprep.subr.mxu0 0.0
    %80 = vmatpush2.xpose.msra.mxu0 0.0
    %81 = vmatprep.subr.mxu0 0.0
    %82 = vmatpush2.xpose.msra.mxu0 0.0
    %83 = vmatprep.subr.mxu0 0.0
    %84 = vmatpush2.xpose.msra.mxu0 0.0
    %85 = vmatprep.subr.mxu0 0.0
    %86 = vmatpush2.xpose.msra.mxu0 0.0
    %87 = vmatprep.subr.mxu0 0.0
    %88 = vmatpush2.xpose.msra.mxu0 0.0
    %89 = vmatprep.subr.mxu0 0.0
    %90 = vmatpush2.xpose.msra.mxu0 0.0
    %91 = vmatprep.subr.mxu0 0.0
    %92 = vmatpush2.xpose.msra.mxu0 0.0
    %93 = vmatprep.subr.mxu0 0.0
    %94 = vmatpush2.xpose.msra.mxu0 0.0
    %95 = vmatprep.subr.mxu0 0.0
    %96 = vmatpush2.xpose.msra.mxu0 0.0
    %97 = vmatprep.subr.mxu0 0.0
    %98 = vmatpush2.xpose.msra.mxu0 0.0
    %99 = vmatprep.subr.mxu0 0.0
    %100 = vmatpush2.xpose.msra.mxu0 0.0
    %101 = vmatprep.subr.mxu0 0.0
    %102 = vmatpush2.xpose.msra.mxu0 0.0
    %103 = vmatprep.subr.mxu0 0.0
    %104 = vmatpush2.xpose.msra.mxu0 0.0
    %105 = vmatprep.subr.mxu0 0.0
    %106 = vmatpush2.xpose.msra.mxu0 0.0
    %107 = vmatprep.subr.mxu0 0.0
    %108 = vmatpush2.xpose.msra.mxu0 0.0
    %109 = vmatprep.mubr.f32.mxu0 0.0
    %110 = vmatmul.mubr.f32.gmra.mxu0 %v40
    %v111 = vpop.f32.mrf.mxu0
    %v112 = vadd.f32 0.0, %v111
    %v113 = vpop.f32.mrf.mxu0
    %114 = vdwg.mxu0
    %v115 = vld [vmem:[%s2] sm:$0xff]
    %117 = vset.pattern.permute.xlu0 0
    %118 = vperm.xlu0 %117, %v115
    %v119 = vpop.permute.xlu0 %118
    %v121 = vadd.f32 %v112, %v119
    %v122 = vmax.f32 %v121, 0.0
    %v123 = vld [vmem:[%s3] sm:$0x1]
    %v125 = vlaneseq
    %v126 = vshrl.u32 %v125, 7
    %v127 = vsub.s32 0, %v126
    %v128 = vrot.slane %v123, %v127
    %v130 = vadd.f32 %v112, %v128
    %v131 = vmax.f32 %v130, 0.0
    %v132 = vadd.f32 %v122, %v131
    %v133 = vadd.f32 %v132, 0.0
    %v134 = vld [vmem:[#allocation5] sm:$0xff]
    %v135 = vadd.f32 %v134, %v133
    %vm136 = vcmask 64512
    %137 = vst.msk [vmem:[#allocation5] sm:$0xff] %vm136, %v135
    // Predicated region
    $region26: #{tpu_custom_call.1} parent=1 // pred_check
      _
    $region27: #{tpu_custom_call.1} parent=1 // pred_check_branch
      %139 = sbr.rel (0) target = $region29
    $region28: #{tpu_custom_call.1} parent=1 // pred_region
      %s141 = ssub.s32 128, 128
      %142 = vsyncadd [#allocation4], %s141
      %s144 = sshll.u32 [#allocation5], 4
      %s145 = int_to_ptr.vmem [resolvable:$true] %s144
      %147 = dma.vmem_to_hbm [thread:$0]  %s145, 128, %s4, [#allocation4]
    $region29: #{tpu_custom_call.1} parent=1 // pred_fallthru
      _
    // Predicated region
    $region30: #{tpu_custom_call.1} parent=1 // pred_check
      _
    $region31: #{tpu_custom_call.1} parent=1 // pred_check_branch
      %149 = sbr.rel (0) target = $region33
    $region32: #{tpu_custom_call.1} parent=1 // pred_region
      %150 = dma.done [#allocation4], 128
    $region33: #{tpu_custom_call.1} parent=1 // pred_fallthru
      _
    %151 = vsyncpa [#allocation3], 1
    %152 = vsyncpa [#allocation4], 1

</llo_original>
